<compile_context>
chip_gen: v6e
topology: v6e:2x2x1
jax: 0.10.0
libtpu: 0.0.40
codegen_flags: <defaults>
</compile_context>

<pallas_src>
import jax
import jax.numpy as jnp
import numpy as np
from jax import lax
from jax.experimental import pallas as pl
from jax.experimental.pallas import tpu as pltpu

# ---------------- model hyper-params (consistent with FCN.__init__) -----------
N_INPUT = 2
N_OUTPUT = 1
N_HIDDEN = 32
N_LAYERS = 3          # -> 1 input linear, (N_LAYERS-1) hidden linears, 1 output linear
BATCH = 8             # small smoke-test batch
LANE = 128


def _round_up(x, m):
    return ((x + m - 1) // m) * m


def _cdiv(a, b):
    return -(-a // b)


# ---------------- Pallas kernel ------------------------------------------------
def fcn_kernel(x_ref, w_in_ref, b_in_ref, w_hid_ref, b_hid_ref,
               w_out_ref, b_out_ref, o_ref):
    """Packed FCN forward for one batch tile.

    x_ref     : [tm/PACK, PACK*n_in]    4 batch rows interleaved per packed row
    w_in_ref  : [PACK*n_in, 128]        block-diagonal input weights
    b_in_ref  : [1, 128]                (f32) tiled input bias
    w_hid_ref : [n_hid, 128, 128]       block-diagonal hidden weights
    b_hid_ref : [n_hid, 1, 128]         (f32) tiled hidden biases
    w_out_ref : [PACK*n_out, 128]       block-diagonal output weights
    b_out_ref : [PACK*n_out, 1]         (f32) output bias column
    o_ref     : [PACK*n_out, tm/PACK]   transposed, lane-dense output slab
    """
    cdt = w_in_ref.dtype  # matmul-input dtype (f32 default; bf16 on v6e/v7x)

    # Input layer (K = PACK*n_in = 8, folded into the block-diagonal packing).
    h = jnp.tanh(
        jnp.dot(x_ref[...], w_in_ref[...], preferred_element_type=jnp.float32)
        + b_in_ref[...])

    # Hidden layers: one fully lane-dense 128-wide matmul + tanh each
    # (statically unrolled; N_LAYERS is small and static).
    for i in range(w_hid_ref.shape[0]):
        h = jnp.tanh(
            jnp.dot(h.astype(cdt), w_hid_ref[i],
                    preferred_element_type=jnp.float32)
            + b_hid_ref[i])

    # Output layer computed directly in the transposed (lane-dense) layout:
    #   out_t[g*n_out + o, i] = sum_k h[i, g*H + k] * w_out[k, o] + b_out[o]
    # (NT matmul: contract last dims of both operands, like q @ k^T.)
    out_t = lax.dot_general(
        w_out_ref[...], h.astype(cdt),
        dimension_numbers=(((1,), (1,)), ((), ())),
        preferred_element_type=jnp.float32) + b_out_ref[...]

    o_ref[...] = out_t.astype(o_ref.dtype)


# ---------------- block-diagonal weight packing ---------------------------------
def _pack_params(params, pack, compute_dtype):
    w_in, b_in, w_hid, b_hid, w_out, b_out = params
    n_in, H = w_in.shape
    n_hid = w_hid.shape[0]
    n_out = w_out.shape[1]
    width = pack * H                       # == LANE

    w_in_bd = jnp.zeros((pack * n_in, width), jnp.float32)
    w_out_bd = jnp.zeros((pack * n_out, width), jnp.float32)
    w_hid_bd = jnp.zeros((n_hid, width, width), jnp.float32)
    for g in range(pack):
        w_in_bd = w_in_bd.at[g * n_in:(g + 1) * n_in, g * H:(g + 1) * H].set(w_in)
        w_out_bd = w_out_bd.at[g * n_out:(g + 1) * n_out, g * H:(g + 1) * H].set(w_out.T)
        w_hid_bd = w_hid_bd.at[:, g * H:(g + 1) * H, g * H:(g + 1) * H].set(w_hid)

    b_in_t = jnp.tile(b_in, (1, pack)).astype(jnp.float32)              # [1, 128]
    b_hid_t = jnp.tile(b_hid, (1, 1, pack)).astype(jnp.float32)         # [n_hid, 1, 128]
    b_out_c = jnp.tile(b_out.reshape(n_out, 1), (pack, 1)).astype(jnp.float32)

    return (w_in_bd.astype(compute_dtype), b_in_t,
            w_hid_bd.astype(compute_dtype), b_hid_t,
            w_out_bd.astype(compute_dtype), b_out_c)


# ---------------- wrapper --------------------------------------------------------
def fcn_forward(x, params, *, tm=4096, compute_dtype=jnp.float32):
    w_in, b_in, w_hid, b_hid, w_out, b_out = params
    B, n_in = x.shape
    H = w_in.shape[1]
    n_out = w_out.shape[1]
    n_hid = w_hid.shape[0]

    assert LANE % H == 0, "lane packing requires N_HIDDEN to divide 128"
    pack = LANE // H                      # 4 batch rows interleaved per packed row

    (w_in_bd, b_in_t, w_hid_bd, b_hid_t,
     w_out_bd, b_out_c) = _pack_params(params, pack, compute_dtype)

    # ---- batch tile / padding: large tiles, bounded padding waste --------------
    tile_gran = pack * LANE               # 512 rows: keeps packed lane/sublane dims legal
    b_pad_min = _round_up(B, 4 * pack)    # 32-row granularity for the packing
    if b_pad_min <= max(tm, tile_gran):
        n_tiles, tm_rows = 1, b_pad_min                       # single small tile
    else:
        n_tiles = _cdiv(b_pad_min, _round_up(tm, tile_gran))  # >=2 tiles: v7x's 2 TCs split
        tm_rows = _round_up(_cdiv(b_pad_min, n_tiles), tile_gran)  # even split, low padding
    b_pad = n_tiles * tm_rows
    tm_p = tm_rows // pack

    x_p = x.astype(jnp.float32)
    if b_pad != B:
        x_p = jnp.pad(x_p, ((0, b_pad - B), (0, 0)))
    # Interleave `pack` consecutive batch rows into one packed row (free reshape).
    x_packed = x_p.reshape(b_pad // pack, pack * n_in).astype(compute_dtype)

    cost = pl.CostEstimate(
        flops=2 * b_pad * (n_in * H + n_hid * H * H + H * n_out),
        transcendentals=b_pad * H * (1 + n_hid),
        bytes_accessed=4 * (B * n_in + B * n_out
                            + w_in.size + b_in.size + w_hid.size + b_hid.size
                            + w_out.size + b_out.size),
    )

    out_t = pl.pallas_call(
        fcn_kernel,
        out_shape=jax.ShapeDtypeStruct((pack * n_out, b_pad // pack), jnp.float32),
        grid=(n_tiles,),
        in_specs=[
            pl.BlockSpec((tm_p, pack * n_in), lambda i: (i, 0)),       # x: streamed per tile
            pl.BlockSpec((pack * n_in, LANE), lambda i: (0, 0)),       # w_in: resident
            pl.BlockSpec((1, LANE), lambda i: (0, 0)),                 # b_in: resident
            pl.BlockSpec((n_hid, LANE, LANE), lambda i: (0, 0, 0)),    # w_hid: resident
            pl.BlockSpec((n_hid, 1, LANE), lambda i: (0, 0, 0)),       # b_hid: resident
            pl.BlockSpec((pack * n_out, LANE), lambda i: (0, 0)),      # w_out: resident
            pl.BlockSpec((pack * n_out, 1), lambda i: (0, 0)),         # b_out: resident
        ],
        out_specs=pl.BlockSpec((pack * n_out, tm_p), lambda i: (0, i)),
        compiler_params=pltpu.CompilerParams(
            dimension_semantics=("parallel",)),                        # v7x: 2 TCs split batch
        cost_estimate=cost,
    )(x_packed, w_in_bd, b_in_t, w_hid_bd, b_hid_t, w_out_bd, b_out_c)

    # Un-interleave: out_t[g*n_out + o, i] is output feature o of batch row pack*i + g.
    out = out_t.reshape(pack, n_out, b_pad // pack).transpose(2, 0, 1)
    return out.reshape(b_pad, n_out)[:B]


# ---------------- deterministic parameter init ---------------------------------
def init_params(key):
    def linear_init(key, fan_in, fan_out):
        # PyTorch nn.Linear default: U(-1/sqrt(fan_in), 1/sqrt(fan_in))
        kw, kb = jax.random.split(key)
        bound = 1.0 / np.sqrt(fan_in)
        w = jax.random.uniform(kw, (fan_in, fan_out), jnp.float32, -bound, bound)
        b = jax.random.uniform(kb, (1, fan_out), jnp.float32, -bound, bound)
        return w, b

    keys = jax.random.split(key, N_LAYERS + 1)
    w_in, b_in = linear_init(keys[0], N_INPUT, N_HIDDEN)

    w_hid_list, b_hid_list = [], []
    for i in range(N_LAYERS - 1):
        w, b = linear_init(keys[1 + i], N_HIDDEN, N_HIDDEN)
        w_hid_list.append(w)
        b_hid_list.append(b)
    w_hid = jnp.stack(w_hid_list, axis=0)               # (N_LAYERS-1, H, H)
    b_hid = jnp.stack(b_hid_list, axis=0)               # (N_LAYERS-1, 1, H)

    w_out, b_out = linear_init(keys[N_LAYERS], N_HIDDEN, N_OUTPUT)
    return w_in, b_in, w_hid, b_hid, w_out, b_out


# ---------------- pure-JAX reference for sanity check ---------------------------
def fcn_reference(x, params):
    w_in, b_in, w_hid, b_hid, w_out, b_out = params
    h = jnp.tanh(x @ w_in + b_in)
    for i in range(w_hid.shape[0]):
        h = jnp.tanh(h @ w_hid[i] + b_hid[i])
    return h @ w_out + b_out


if __name__ == "__main__":
    key = jax.random.PRNGKey(0)
    k_x, k_p, k_big = jax.random.split(key, 3)
    params = init_params(k_p)

    # 1) small smoke test (B=8, single tile, full-array blocks)
    x = jax.random.normal(k_x, (BATCH, N_INPUT), jnp.float32)
    out = jax.block_until_ready(fcn_forward(x, params))
    ref = fcn_reference(x, params)
    np.testing.assert_allclose(np.asarray(out), np.asarray(ref),
                               rtol=1e-5, atol=1e-5)
    assert out.shape == (BATCH, N_OUTPUT)

    # 2) multi-tile streaming path with an awkward batch size: exercises the
    #    batch grid (>=2 parallel tiles), resident weights, 4-row lane packing,
    #    padding/unpacking, and the lane-dense transposed output writeback.
    x_big = jax.random.normal(k_big, (10_037, N_INPUT), jnp.float32)
    out_big = jax.block_until_ready(fcn_forward(x_big, params, tm=4096))
    ref_big = fcn_reference(x_big, params)
    np.testing.assert_allclose(np.asarray(out_big), np.asarray(ref_big),
                               rtol=1e-5, atol=1e-5)
    assert out_big.shape == (10_037, N_OUTPUT)

    # 3) optional bf16-matmul path (recommended on v6e/v7x); f32 accumulation
    #    and f32 tanh are kept, so accuracy stays close to the f32 reference.
    out_bf16 = jax.block_until_ready(
        fcn_forward(x_big, params, tm=4096, compute_dtype=jnp.bfloat16))
    assert np.max(np.abs(np.asarray(out_bf16) - np.asarray(ref_big))) < 0.1

    print("KERNEL_OK")
</pallas_src>

<mosaic_0001>
module attributes {stable_mosaic.version = 11 : i64} {
  func.func @fcn_kernel(%arg0: i32, %arg1: memref<4x8xf32, #tpu.memory_space<vmem>>, %arg2: memref<8x128xf32, #tpu.memory_space<vmem>>, %arg3: memref<1x128xf32, #tpu.memory_space<vmem>>, %arg4: memref<2x128x128xf32, #tpu.memory_space<vmem>>, %arg5: memref<2x1x128xf32, #tpu.memory_space<vmem>>, %arg6: memref<4x128xf32, #tpu.memory_space<vmem>>, %arg7: memref<4x1xf32, #tpu.memory_space<vmem>>, %arg8: memref<4x4xf32, #tpu.memory_space<vmem>>) attributes {dimension_semantics = [#tpu.dimension_semantics<parallel>], iteration_bounds = array<i64: 1>, scalar_prefetch = 0 : i64, scratch_operands = 0 : i64, tpu.core_type = #tpu.core_type<tc>, window_params = [{transform_indices = @transform_0, window_bounds = array<i64: 4, 8>}, {pipeline_mode = #tpu.pipeline_mode<synchronous>, transform_indices = @transform_1, window_bounds = array<i64: 8, 128>}, {pipeline_mode = #tpu.pipeline_mode<synchronous>, transform_indices = @transform_2, window_bounds = array<i64: 1, 128>}, {pipeline_mode = #tpu.pipeline_mode<synchronous>, transform_indices = @transform_3, window_bounds = array<i64: 2, 128, 128>}, {pipeline_mode = #tpu.pipeline_mode<synchronous>, transform_indices = @transform_4, window_bounds = array<i64: 2, 1, 128>}, {pipeline_mode = #tpu.pipeline_mode<synchronous>, transform_indices = @transform_5, window_bounds = array<i64: 4, 128>}, {pipeline_mode = #tpu.pipeline_mode<synchronous>, transform_indices = @transform_6, window_bounds = array<i64: 4, 1>}, {transform_indices = @transform_7, window_bounds = array<i64: 4, 4>}]} {
    %c0 = arith.constant 0 : index
    %c0_0 = arith.constant 0 : index
    %0 = vector.load %arg1[%c0, %c0_0] : memref<4x8xf32, #tpu.memory_space<vmem>>, vector<4x8xf32>
    %c0_1 = arith.constant 0 : index
    %c0_2 = arith.constant 0 : index
    %1 = vector.load %arg2[%c0_1, %c0_2] : memref<8x128xf32, #tpu.memory_space<vmem>>, vector<8x128xf32>
    %cst = arith.constant dense<0.000000e+00> : vector<4x128xf32>
    %2 = tpu.matmul %0, %1, %cst {dimension_numbers = #tpu.dot_dimension_numbers<[1], [0], [0], [1], [0, 0, 1, 1], [], []>} : vector<4x8xf32>, vector<8x128xf32>, vector<4x128xf32> -> vector<4x128xf32>
    %c0_3 = arith.constant 0 : index
    %c0_4 = arith.constant 0 : index
    %3 = vector.load %arg3[%c0_3, %c0_4] : memref<1x128xf32, #tpu.memory_space<vmem>>, vector<1x128xf32>
    %4 = vector.broadcast %3 : vector<1x128xf32> to vector<4x128xf32>
    %5 = arith.addf %2, %4 : vector<4x128xf32>
    %6 = math.tanh %5 : vector<4x128xf32>
    %c0_5 = arith.constant 0 : index
    %c0_6 = arith.constant 0 : index
    %c0_7 = arith.constant 0 : index
    %7 = vector.load %arg4[%c0_5, %c0_6, %c0_7] : memref<2x128x128xf32, #tpu.memory_space<vmem>>, vector<1x128x128xf32>
    %8 = vector.shape_cast %7 : vector<1x128x128xf32> to vector<128x128xf32>
    %cst_8 = arith.constant dense<0.000000e+00> : vector<4x128xf32>
    %9 = tpu.matmul %6, %8, %cst_8 {dimension_numbers = #tpu.dot_dimension_numbers<[1], [0], [0], [1], [0, 0, 1, 1], [], []>} : vector<4x128xf32>, vector<128x128xf32>, vector<4x128xf32> -> vector<4x128xf32>
    %c0_9 = arith.constant 0 : index
    %c0_10 = arith.constant 0 : index
    %c0_11 = arith.constant 0 : index
    %10 = vector.load %arg5[%c0_9, %c0_10, %c0_11] : memref<2x1x128xf32, #tpu.memory_space<vmem>>, vector<1x1x128xf32>
    %11 = vector.shape_cast %10 : vector<1x1x128xf32> to vector<1x128xf32>
    %12 = vector.broadcast %11 : vector<1x128xf32> to vector<4x128xf32>
    %13 = arith.addf %9, %12 : vector<4x128xf32>
    %14 = math.tanh %13 : vector<4x128xf32>
    %c1 = arith.constant 1 : index
    %c0_12 = arith.constant 0 : index
    %c0_13 = arith.constant 0 : index
    %15 = vector.load %arg4[%c1, %c0_12, %c0_13] : memref<2x128x128xf32, #tpu.memory_space<vmem>>, vector<1x128x128xf32>
    %16 = vector.shape_cast %15 : vector<1x128x128xf32> to vector<128x128xf32>
    %cst_14 = arith.constant dense<0.000000e+00> : vector<4x128xf32>
    %17 = tpu.matmul %14, %16, %cst_14 {dimension_numbers = #tpu.dot_dimension_numbers<[1], [0], [0], [1], [0, 0, 1, 1], [], []>} : vector<4x128xf32>, vector<128x128xf32>, vector<4x128xf32> -> vector<4x128xf32>
    %c1_15 = arith.constant 1 : index
    %c0_16 = arith.constant 0 : index
    %c0_17 = arith.constant 0 : index
    %18 = vector.load %arg5[%c1_15, %c0_16, %c0_17] : memref<2x1x128xf32, #tpu.memory_space<vmem>>, vector<1x1x128xf32>
    %19 = vector.shape_cast %18 : vector<1x1x128xf32> to vector<1x128xf32>
    %20 = vector.broadcast %19 : vector<1x128xf32> to vector<4x128xf32>
    %21 = arith.addf %17, %20 : vector<4x128xf32>
    %22 = math.tanh %21 : vector<4x128xf32>
    %c0_18 = arith.constant 0 : index
    %c0_19 = arith.constant 0 : index
    %23 = vector.load %arg6[%c0_18, %c0_19] : memref<4x128xf32, #tpu.memory_space<vmem>>, vector<4x128xf32>
    %cst_20 = arith.constant dense<0.000000e+00> : vector<4x4xf32>
    %24 = tpu.matmul %23, %22, %cst_20 {dimension_numbers = #tpu.dot_dimension_numbers<[1], [1], [0], [0], [0, 0, 1, 0], [], []>} : vector<4x128xf32>, vector<4x128xf32>, vector<4x4xf32> -> vector<4x4xf32>
    %c0_21 = arith.constant 0 : index
    %c0_22 = arith.constant 0 : index
    %25 = vector.load %arg7[%c0_21, %c0_22] : memref<4x1xf32, #tpu.memory_space<vmem>>, vector<4x1xf32>
    %26 = vector.broadcast %25 : vector<4x1xf32> to vector<4x4xf32>
    %27 = arith.addf %24, %26 : vector<4x4xf32>
    %c0_23 = arith.constant 0 : index
    %c0_24 = arith.constant 0 : index
    %28 = vector.load %arg8[%c0_23, %c0_24] : memref<4x4xf32, #tpu.memory_space<vmem>>, vector<4x4xf32>
    tpu.vector_store %arg8[%c0_23, %c0_24], %27 {strides = array<i32>} : memref<4x4xf32, #tpu.memory_space<vmem>>, vector<4x4xf32>,
    return
  }
  func.func @transform_0(%arg0: i32) -> (i32, i32) {
    %c0_i32 = arith.constant 0 : i32
    %c0_i32_0 = arith.constant 0 : i32
    return %arg0, %c0_i32 : i32, i32
  }
  func.func @transform_1(%arg0: i32) -> (i32, i32) {
    %c0_i32 = arith.constant 0 : i32
    %c0_i32_0 = arith.constant 0 : i32
    %c0_i32_1 = arith.constant 0 : i32
    return %c0_i32, %c0_i32_0 : i32, i32
  }
  func.func @transform_2(%arg0: i32) -> (i32, i32) {
    %c0_i32 = arith.constant 0 : i32
    %c0_i32_0 = arith.constant 0 : i32
    %c0_i32_1 = arith.constant 0 : i32
    return %c0_i32, %c0_i32_0 : i32, i32
  }
  func.func @transform_3(%arg0: i32) -> (i32, i32, i32) {
    %c0_i32 = arith.constant 0 : i32
    %c0_i32_0 = arith.constant 0 : i32
    %c0_i32_1 = arith.constant 0 : i32
    %c0_i32_2 = arith.constant 0 : i32
    return %c0_i32, %c0_i32_0, %c0_i32_1 : i32, i32, i32
  }
  func.func @transform_4(%arg0: i32) -> (i32, i32, i32) {
    %c0_i32 = arith.constant 0 : i32
    %c0_i32_0 = arith.constant 0 : i32
    %c0_i32_1 = arith.constant 0 : i32
    %c0_i32_2 = arith.constant 0 : i32
    return %c0_i32, %c0_i32_0, %c0_i32_1 : i32, i32, i32
  }
  func.func @transform_5(%arg0: i32) -> (i32, i32) {
    %c0_i32 = arith.constant 0 : i32
    %c0_i32_0 = arith.constant 0 : i32
    %c0_i32_1 = arith.constant 0 : i32
    return %c0_i32, %c0_i32_0 : i32, i32
  }
  func.func @transform_6(%arg0: i32) -> (i32, i32) {
    %c0_i32 = arith.constant 0 : i32
    %c0_i32_0 = arith.constant 0 : i32
    %c0_i32_1 = arith.constant 0 : i32
    return %c0_i32, %c0_i32_0 : i32, i32
  }
  func.func @transform_7(%arg0: i32) -> (i32, i32) {
    %c0_i32 = arith.constant 0 : i32
    %c0_i32_0 = arith.constant 0 : i32
    return %c0_i32, %arg0 : i32, i32
  }
}

</mosaic_0001>

<llo_original>
// kernel: tpu_custom_call.1
$region0: #{tpu_custom_call.1}
  #allocation0 [shape = 'u32[]', space=smem, size = 0x4, offset = 0x4, fixed_abs, tag = 'smem constant byte address 0x4 - core index']
  #allocation1 [shape = 'u32[144,128]{1,0:T(1,128)}', space=vmem, size = 0x12000, scoped, tag = 'internal scratch']
  %s0 = inlined_call_operand.vmem [shape: f32[4,8], index: 0, kind: input, shape index: {}]
  %s1 = inlined_call_operand.hbm [shape: f32[8,128], index: 1, kind: input, shape index: {}]
  %s2 = inlined_call_operand.hbm [shape: f32[1,128], index: 2, kind: input, shape index: {}]
  %s3 = inlined_call_operand.hbm [shape: f32[2,128,128], index: 3, kind: input, shape index: {}]
  %s4 = inlined_call_operand.vmem [shape: f32[2,1,128], index: 4, kind: input, shape index: {}]
  %s5 = inlined_call_operand.vmem [shape: f32[4,128], index: 5, kind: input, shape index: {}]
  %s6 = inlined_call_operand.vmem [shape: f32[4,1], index: 6, kind: input, shape index: {}]
  %s7 = inlined_call_operand.hbm [shape: f32[4,4], index: 7, kind: output, shape index: {}]
  %s8 = sld [smem:[#allocation0]]
  $region50: #{tpu_custom_call.1} parent=0
    _
  %s10 = ssub.s32 1, %s8
  %s11 = scalar_select 0, %s10, %s8
  $region1: #{tpu_custom_call.1} parent=0
    #allocation2 [shape = 'u8[4096]{0}', space=vmem, size = 0x1000, scoped, tag = 'input window, operand 1, single buffered']
    #allocation3 [shape = 's32[1]{0}', space=sflag, size = 0x4, scoped, tag = 'scoped memory for tpu_custom_call.1']
    #allocation4 [shape = 's32[1]{0}', space=sflag, size = 0x4, scoped, tag = 'scoped memory for tpu_custom_call.1']
    #allocation5 [shape = 'u8[512]{0}', space=vmem, size = 0x400, scoped, tag = 'input window, operand 2, single buffered']
    #allocation6 [shape = 's32[1]{0}', space=sflag, size = 0x4, scoped, tag = 'scoped memory for tpu_custom_call.1']
    #allocation7 [shape = 'u8[131072]{0}', space=vmem, size = 0x20000, scoped, tag = 'input window, operand 3, single buffered']
    #allocation8 [shape = 'u8[2048]{0}', space=vmem, size = 0x800, scoped, tag = 'output window, operand 0, single buffered']
    %12 = vsyncpa [#allocation3], 0
    %13 = vsyncpa [#allocation6], 0
    %14 = vsyncpa [#allocation4], 0
    // Predicated region
    $region2: #{tpu_custom_call.1} parent=1 // pred_check
      _
    $region3: #{tpu_custom_call.1} parent=1 // pred_check_branch
      %16 = sbr.rel (0) target = $region5
    $region4: #{tpu_custom_call.1} parent=1 // pred_region
      _
    $region5: #{tpu_custom_call.1} parent=1 // pred_fallthru
      _
    // Predicated region
    $region6: #{tpu_custom_call.1} parent=1 // pred_check
      _
    $region7: #{tpu_custom_call.1} parent=1 // pred_check_branch
      %18 = sbr.rel (0) target = $region9
    $region8: #{tpu_custom_call.1} parent=1 // pred_region
      %s20 = ssub.s32 128, 128
      %21 = vsyncadd [#allocation3], %s20
      %s23 = sshll.u32 [#allocation2], 4
      %s24 = int_to_ptr.vmem [resolvable:$true] %s23
      %26 = dma.hbm_to_vmem [thread:$0]  %s1, 128, %s24, [#allocation3]
    $region9: #{tpu_custom_call.1} parent=1 // pred_fallthru
      _
    // Predicated region
    $region10: #{tpu_custom_call.1} parent=1 // pred_check
      _
    $region11: #{tpu_custom_call.1} parent=1 // pred_check_branch
      %28 = sbr.rel (0) target = $region13
    $region12: #{tpu_custom_call.1} parent=1 // pred_region
      %s30 = ssub.s32 16, 16
      %31 = vsyncadd [#allocation6], %s30
      %s33 = sshll.u32 [#allocation5], 4
      %s34 = int_to_ptr.vmem [resolvable:$true] %s33
      %36 = dma.hbm_to_vmem [thread:$0]  %s2, 16, %s34, [#allocation6]
    $region13: #{tpu_custom_call.1} parent=1 // pred_fallthru
      _
    // Predicated region
    $region14: #{tpu_custom_call.1} parent=1 // pred_check
      _
    $region15: #{tpu_custom_call.1} parent=1 // pred_check_branch
      %38 = sbr.rel (0) target = $region17
    $region16: #{tpu_custom_call.1} parent=1 // pred_region
      %s40 = ssub.s32 4096, 4096
      %41 = vsyncadd [#allocation6], %s40
      %s42 = sshll.u32 [#allocation7], 4
      %s43 = int_to_ptr.vmem [resolvable:$true] %s42
      %48 = dma.hbm_to_vmem [thread:$0]  %s3, 4096, %s43, [#allocation6], 128, 128, 8
    $region17: #{tpu_custom_call.1} parent=1 // pred_fallthru
      _
    // Predicated region
    $region18: #{tpu_custom_call.1} parent=1 // pred_check
      _
    $region19: #{tpu_custom_call.1} parent=1 // pred_check_branch
      %50 = sbr.rel (0) target = $region21
    $region20: #{tpu_custom_call.1} parent=1 // pred_region
      _
    $region21: #{tpu_custom_call.1} parent=1 // pred_fallthru
      _
    // Predicated region
    $region22: #{tpu_custom_call.1} parent=1 // pred_check
      _
    $region23: #{tpu_custom_call.1} parent=1 // pred_check_branch
      %52 = sbr.rel (0) target = $region25
    $region24: #{tpu_custom_call.1} parent=1 // pred_region
      _
    $region25: #{tpu_custom_call.1} parent=1 // pred_fallthru
      _
    // Predicated region
    $region26: #{tpu_custom_call.1} parent=1 // pred_check
      _
    $region27: #{tpu_custom_call.1} parent=1 // pred_check_branch
      %54 = sbr.rel (0) target = $region29
    $region28: #{tpu_custom_call.1} parent=1 // pred_region
      _
    $region29: #{tpu_custom_call.1} parent=1 // pred_fallthru
      _
    // Predicated region
    $region30: #{tpu_custom_call.1} parent=1 // pred_check
      _
    $region31: #{tpu_custom_call.1} parent=1 // pred_check_branch
      %56 = sbr.rel (0) target = $region33
    $region32: #{tpu_custom_call.1} parent=1 // pred_region
      %57 = dma.done [#allocation3], 128
    $region33: #{tpu_custom_call.1} parent=1 // pred_fallthru
      _
    // Predicated region
    $region34: #{tpu_custom_call.1} parent=1 // pred_check
      _
    $region35: #{tpu_custom_call.1} parent=1 // pred_check_branch
      %59 = sbr.rel (0) target = $region37
    $region36: #{tpu_custom_call.1} parent=1 // pred_region
      %60 = dma.done [#allocation6], 16
    $region37: #{tpu_custom_call.1} parent=1 // pred_fallthru
      _
    // Predicated region
    $region38: #{tpu_custom_call.1} parent=1 // pred_check
      _
    $region39: #{tpu_custom_call.1} parent=1 // pred_check_branch
      %62 = sbr.rel (0) target = $region41
    $region40: #{tpu_custom_call.1} parent=1 // pred_region
      %63 = dma.done [#allocation6], 4096
    $region41: #{tpu_custom_call.1} parent=1 // pred_fallthru
      _
    %v64 = vld [vmem:[%s0] sm:$0xf]
    %v65 = vld [vmem:[#allocation2] sm:$0xff]
    %v66 = vld [vmem:[#allocation5] sm:$0x1]
    %v68 = vlaneseq
    %v69 = vshrl.u32 %v68, 7
    %v70 = vsub.s32 0, %v69
    %v71 = vrot.slane %v66, %v70
    %vm73 = vcmask 64512
    %v75 = vsel %vm73, %v64, 0
    %77 = vmatprep.subr.mxu0 0.0
    %78 = vmatpush1.msra.mxu0 0.0
    %79 = vmatprep.subr.mxu0 0.0
    %80 = vmatpush1.msra.mxu0 0.0
    %81 = vmatprep.subr.mxu0 0.0
    %82 = vmatpush1.msra.mxu0 0.0
    %83 = vmatprep.subr.mxu0 0.0
    %84 = vmatpush1.msra.mxu0 0.0
    %85 = vmatprep.subr.mxu0 0.0
    %86 = vmatpush1.msra.mxu0 0.0
    %87 = vmatprep.subr.mxu0 0.0
    %88 = vmatpush1.msra.mxu0 0.0
    %89 = vmatprep.subr.mxu0 0.0
    %90 = vmatpush1.msra.mxu0 0.0
    %91 = vmatprep.subr.mxu0 0.0
    %92 = vmatpush1.msra.mxu0 0.0
    %93 = vmatprep.subr.mxu0 0.0
    %94 = vmatpush1.msra.mxu0 0.0
    %95 = vmatprep.subr.mxu0 0.0
    %96 = vmatpush1.msra.mxu0 0.0
    %97 = vmatprep.subr.mxu0 0.0
    %98 = vmatpush1.msra.mxu0 0.0
    %99 = vmatprep.subr.mxu0 0.0
    %100 = vmatpush1.msra.mxu0 0.0
    %101 = vmatprep.subr.mxu0 0.0
    %102 = vmatpush1.msra.mxu0 0.0
    %103 = vmatprep.subr.mxu0 0.0
    %104 = vmatpush1.msra.mxu0 0.0
    %105 = vmatprep.subr.mxu0 0.0
    %106 = vmatpush1.msra.mxu0 0.0
    %107 = vmatprep.subr.mxu0 0.0
    %108 = vmatpush1.msra.mxu0 %v65
    %109 = vmatprep.subr.mxu0 0.0
    %110 = vmatpush2.msra.mxu0 0.0
    %111 = vmatprep.subr.mxu0 0.0
    %112 = vmatpush2.msra.mxu0 0.0
    %113 = vmatprep.subr.mxu0 0.0
    %114 = vmatpush2.msra.mxu0 0.0
    %115 = vmatprep.subr.mxu0 0.0
    %116 = vmatpush2.msra.mxu0 0.0
    %117 = vmatprep.subr.mxu0 0.0
    %118 = vmatpush2.msra.mxu0 0.0
    %119 = vmatprep.subr.mxu0 0.0
    %120 = vmatpush2.msra.mxu0 0.0
    %121 = vmatprep.subr.mxu0 0.0
    %122 = vmatpush2.msra.mxu0 0.0
    %123 = vmatprep.subr.mxu0 0.0
    %124 = vmatpush2.msra.mxu0 0.0
    %125 = vmatprep.subr.mxu0 0.0
    %126 = vmatpush2.msra.mxu0 0.0
    %127 = vmatprep.subr.mxu0 0.0
    %128 = vmatpush2.msra.mxu0 0.0
    %129 = vmatprep.subr.mxu0 0.0
    %130 = vmatpush2.msra.mxu0 0.0
    %131 = vmatprep.subr.mxu0 0.0
    %132 = vmatpush2.msra.mxu0 0.0
    %133 = vmatprep.subr.mxu0 0.0
    %134 = vmatpush2.msra.mxu0 0.0
    %135 = vmatprep.subr.mxu0 0.0
    %136 = vmatpush2.msra.mxu0 0.0
    %137 = vmatprep.subr.mxu0 0.0
    %138 = vmatpush2.msra.mxu0 0.0
    %139 = vmatprep.subr.mxu0 0.0
    %140 = vmatpush2.msra.mxu0 0.0
    %141 = vmatprep.mubr.f32.mxu0 0.0
    %142 = vmatmul.mubr.f32.gmra.mxu0 %v75
    %v143 = vpop.f32.mrf.mxu0
    %v144 = vadd.f32 %v71, %v143
    %v145 = vpop.f32.mrf.mxu0
    %146 = vdwg.mxu0
    %v147 = vtanh.pop %v144
    %v148 = vld [vmem:[#allocation7] sm:$0xff]
    %v149 = vld [vmem:[#allocation7 + $0x8] sm:$0xff]
    %v150 = vld [vmem:[#allocation7 + $0x10] sm:$0xff]
    %v151 = vld [vmem:[#allocation7 + $0x18] sm:$0xff]
    %v152 = vld [vmem:[#allocation7 + $0x20] sm:$0xff]
    %v153 = vld [vmem:[#allocation7 + $0x28] sm:$0xff]
    %v154 = vld [vmem:[#allocation7 + $0x30] sm:$0xff]
    %v155 = vld [vmem:[#allocation7 + $0x38] sm:$0xff]
    %v156 = vld [vmem:[#allocation7 + $0x40] sm:$0xff]
    %v157 = vld [vmem:[#allocation7 + $0x48] sm:$0xff]
    %v158 = vld [vmem:[#allocation7 + $0x50] sm:$0xff]
    %v159 = vld [vmem:[#allocation7 + $0x58] sm:$0xff]
    %v160 = vld [vmem:[#allocation7 + $0x60] sm:$0xff]
    %v161 = vld [vmem:[#allocation7 + $0x68] sm:$0xff]
    %v162 = vld [vmem:[#allocation7 + $0x70] sm:$0xff]
    %v163 = vld [vmem:[#allocation7 + $0x78] sm:$0xff]
    %v164 = vld [vmem:[%s4] sm:$0x1]
    %v166 = vlaneseq
    %v167 = vshrl.u32 %v166, 7
    %v168 = vsub.s32 0, %v167
    %v169 = vrot.slane %v164, %v168
    %171 = vmatprep.subr.mxu0 0.0
    %172 = vmatpush1.msra.mxu0 %v163
    %173 = vmatprep.subr.mxu0 0.0
    %174 = vmatpush1.msra.mxu0 %v162
    %175 = vmatprep.subr.mxu0 0.0
    %176 = vmatpush1.msra.mxu0 %v161
    %177 = vmatprep.subr.mxu0 0.0
    %178 = vmatpush1.msra.mxu0 %v160
    %179 = vmatprep.subr.mxu0 0.0
    %180 = vmatpush1.msra.mxu0 %v159
    %181 = vmatprep.subr.mxu0 0.0
    %182 = vmatpush1.msra.mxu0 %v158
    %183 = vmatprep.subr.mxu0 0.0
    %184 = vmatpush1.msra.mxu0 %v157
    %185 = vmatprep.subr.mxu0 0.0
    %186 = vmatpush1.msra.mxu0 %v156
    %187 = vmatprep.subr.mxu0 0.0
    %188 = vmatpush1.msra.mxu0 %v155
    %189 = vmatprep.subr.mxu0 0.0
    %190 = vmatpush1.msra.mxu0 %v154
    %191 = vmatprep.subr.mxu0 0.0
    %192 = vmatpush1.msra.mxu0 %v153
    %193 = vmatprep.subr.mxu0 0.0
    %194 = vmatpush1.msra.mxu0 %v152
    %195 = vmatprep.subr.mxu0 0.0
    %196 = vmatpush1.msra.mxu0 %v151
    %197 = vmatprep.subr.mxu0 0.0
    %198 = vmatpush1.msra.mxu0 %v150
    %199 = vmatprep.subr.mxu0 0.0
    %200 = vmatpush1.msra.mxu0 %v149
    %201 = vmatprep.subr.mxu0 0.0
    %202 = vmatpush1.msra.mxu0 %v148
    %203 = vmatprep.subr.mxu0 0.0
    %204 = vmatpush2.msra.mxu0 0.0
    %205 = vmatprep.subr.mxu0 0.0
    %206 = vmatpush2.msra.mxu0 0.0
    %207 = vmatprep.subr.mxu0 0.0
    %208 = vmatpush2.msra.mxu0 0.0
    %209 = vmatprep.subr.mxu0 0.0
    %210 = vmatpush2.msra.mxu0 0.0
    %211 = vmatprep.subr.mxu0 0.0
    %212 = vmatpush2.msra.mxu0 0.0
    %213 = vmatprep.subr.mxu0 0.0
    %214 = vmatpush2.msra.mxu0 0.0
    %215 = vmatprep.subr.mxu0 0.0
    %216 = vmatpush2.msra.mxu0 0.0
    %217 = vmatprep.subr.mxu0 0.0
    %218 = vmatpush2.msra.mxu0 0.0
    %219 = vmatprep.subr.mxu0 0.0
    %220 = vmatpush2.msra.mxu0 0.0
    %221 = vmatprep.subr.mxu0 0.0
    %222 = vmatpush2.msra.mxu0 0.0
    %223 = vmatprep.subr.mxu0 0.0
    %224 = vmatpush2.msra.mxu0 0.0
    %225 = vmatprep.subr.mxu0 0.0
    %226 = vmatpush2.msra.mxu0 0.0
    %227 = vmatprep.subr.mxu0 0.0
    %228 = vmatpush2.msra.mxu0 0.0
    %229 = vmatprep.subr.mxu0 0.0
    %230 = vmatpush2.msra.mxu0 0.0
    %231 = vmatprep.subr.mxu0 0.0
    %232 = vmatpush2.msra.mxu0 0.0
    %233 = vmatprep.subr.mxu0 0.0
    %234 = vmatpush2.msra.mxu0 0.0
    %235 = vmatprep.mubr.f32.mxu0 0.0
    %236 = vmatmul.mubr.f32.gmra.mxu0 %v147
    %v237 = vpop.f32.mrf.mxu0
    %v238 = vadd.f32 %v169, %v237
    %v239 = vpop.f32.mrf.mxu0
    %240 = vdwg.mxu0
    %v241 = vtanh.pop %v238
    %s242 = scalar_lea.vmem [#allocation7], 128
    %v243 = vld [vmem:[%s242] sm:$0xff]
    %v244 = vld [vmem:[%s242 + $0x8] sm:$0xff]
    %v245 = vld [vmem:[%s242 + $0x10] sm:$0xff]
    %v246 = vld [vmem:[%s242 + $0x18] sm:$0xff]
    %v247 = vld [vmem:[%s242 + $0x20] sm:$0xff]
    %v248 = vld [vmem:[%s242 + $0x28] sm:$0xff]
    %v249 = vld [vmem:[%s242 + $0x30] sm:$0xff]
    %v250 = vld [vmem:[%s242 + $0x38] sm:$0xff]
    %v251 = vld [vmem:[%s242 + $0x40] sm:$0xff]
    %v252 = vld [vmem:[%s242 + $0x48] sm:$0xff]
    %v253 = vld [vmem:[%s242 + $0x50] sm:$0xff]
    %v254 = vld [vmem:[%s242 + $0x58] sm:$0xff]
    %v255 = vld [vmem:[%s242 + $0x60] sm:$0xff]
    %v256 = vld [vmem:[%s242 + $0x68] sm:$0xff]
    %v257 = vld [vmem:[%s242 + $0x70] sm:$0xff]
    %v258 = vld [vmem:[%s242 + $0x78] sm:$0xff]
    %s259 = scalar_lea.vmem %s4, 1
    %v260 = vld [vmem:[%s259] sm:$0x1]
    %v262 = vlaneseq
    %v263 = vshrl.u32 %v262, 7
    %v264 = vsub.s32 0, %v263
    %v265 = vrot.slane %v260, %v264
    %267 = vmatprep.subr.mxu0 0.0
    %268 = vmatpush1.msra.mxu0 %v258
    %269 = vmatprep.subr.mxu0 0.0
    %270 = vmatpush1.msra.mxu0 %v257
    %271 = vmatprep.subr.mxu0 0.0
    %272 = vmatpush1.msra.mxu0 %v256
    %273 = vmatprep.subr.mxu0 0.0
    %274 = vmatpush1.msra.mxu0 %v255
    %275 = vmatprep.subr.mxu0 0.0
    %276 = vmatpush1.msra.mxu0 %v254
    %277 = vmatprep.subr.mxu0 0.0
    %278 = vmatpush1.msra.mxu0 %v253
    %279 = vmatprep.subr.mxu0 0.0
    %280 = vmatpush1.msra.mxu0 %v252
    %281 = vmatprep.subr.mxu0 0.0
    %282 = vmatpush1.msra.mxu0 %v251
    %283 = vmatprep.subr.mxu0 0.0
    %284 = vmatpush1.msra.mxu0 %v250
    %285 = vmatprep.subr.mxu0 0.0
    %286 = vmatpush1.msra.mxu0 %v249
    %287 = vmatprep.subr.mxu0 0.0
    %288 = vmatpush1.msra.mxu0 %v248
    %289 = vmatprep.subr.mxu0 0.0
    %290 = vmatpush1.msra.mxu0 %v247
    %291 = vmatprep.subr.mxu0 0.0
    %292 = vmatpush1.msra.mxu0 %v246
    %293 = vmatprep.subr.mxu0 0.0
    %294 = vmatpush1.msra.mxu0 %v245
    %295 = vmatprep.subr.mxu0 0.0
    %296 = vmatpush1.msra.mxu0 %v244
    %297 = vmatprep.subr.mxu0 0.0
    %298 = vmatpush1.msra.mxu0 %v243
    %299 = vmatprep.subr.mxu0 0.0
    %300 = vmatpush2.msra.mxu0 0.0
    %301 = vmatprep.subr.mxu0 0.0
    %302 = vmatpush2.msra.mxu0 0.0
    %303 = vmatprep.subr.mxu0 0.0
    %304 = vmatpush2.msra.mxu0 0.0
    %305 = vmatprep.subr.mxu0 0.0
    %306 = vmatpush2.msra.mxu0 0.0
    %307 = vmatprep.subr.mxu0 0.0
    %308 = vmatpush2.msra.mxu0 0.0
    %309 = vmatprep.subr.mxu0 0.0
    %310 = vmatpush2.msra.mxu0 0.0
    %311 = vmatprep.subr.mxu0 0.0
    %312 = vmatpush2.msra.mxu0 0.0
    %313 = vmatprep.subr.mxu0 0.0
    %314 = vmatpush2.msra.mxu0 0.0
    %315 = vmatprep.subr.mxu0 0.0
    %316 = vmatpush2.msra.mxu0 0.0
    %317 = vmatprep.subr.mxu0 0.0
    %318 = vmatpush2.msra.mxu0 0.0
    %319 = vmatprep.subr.mxu0 0.0
    %320 = vmatpush2.msra.mxu0 0.0
    %321 = vmatprep.subr.mxu0 0.0
    %322 = vmatpush2.msra.mxu0 0.0
    %323 = vmatprep.subr.mxu0 0.0
    %324 = vmatpush2.msra.mxu0 0.0
    %325 = vmatprep.subr.mxu0 0.0
    %326 = vmatpush2.msra.mxu0 0.0
    %327 = vmatprep.subr.mxu0 0.0
    %328 = vmatpush2.msra.mxu0 0.0
    %329 = vmatprep.subr.mxu0 0.0
    %330 = vmatpush2.msra.mxu0 0.0
    %331 = vmatprep.mubr.f32.mxu0 0.0
    %332 = vmatmul.mubr.f32.gmra.mxu0 %v241
    %v333 = vpop.f32.mrf.mxu0
    %v334 = vadd.f32 %v265, %v333
    %v335 = vpop.f32.mrf.mxu0
    %336 = vdwg.mxu0
    %v337 = vtanh.pop %v334
    %v338 = vld [vmem:[%s5] sm:$0xf]
    %v339 = vld [vmem:[%s6] sm:$0xf]
    %341 = vset.pattern.permute.xlu0 0
    %342 = vperm.xlu0 %341, %v339
    %v343 = vpop.permute.xlu0 %342
    %345 = vmatprep.subr.mxu0 0.0
    %346 = vmatpush1.xpose.msra.mxu0 0.0
    %347 = vmatprep.subr.mxu0 0.0
    %348 = vmatpush1.xpose.msra.mxu0 0.0
    %349 = vmatprep.subr.mxu0 0.0
    %350 = vmatpush1.xpose.msra.mxu0 0.0
    %351 = vmatprep.subr.mxu0 0.0
    %352 = vmatpush1.xpose.msra.mxu0 0.0
    %353 = vmatprep.subr.mxu0 0.0
    %354 = vmatpush1.xpose.msra.mxu0 0.0
    %355 = vmatprep.subr.mxu0 0.0
    %356 = vmatpush1.xpose.msra.mxu0 0.0
    %357 = vmatprep.subr.mxu0 0.0
    %358 = vmatpush1.xpose.msra.mxu0 0.0
    %359 = vmatprep.subr.mxu0 0.0
    %360 = vmatpush1.xpose.msra.mxu0 0.0
    %361 = vmatprep.subr.mxu0 0.0
    %362 = vmatpush1.xpose.msra.mxu0 0.0
    %363 = vmatprep.subr.mxu0 0.0
    %364 = vmatpush1.xpose.msra.mxu0 0.0
    %365 = vmatprep.subr.mxu0 0.0
    %366 = vmatpush1.xpose.msra.mxu0 0.0
    %367 = vmatprep.subr.mxu0 0.0
    %368 = vmatpush1.xpose.msra.mxu0 0.0
    %369 = vmatprep.subr.mxu0 0.0
    %370 = vmatpush1.xpose.msra.mxu0 0.0
    %371 = vmatprep.subr.mxu0 0.0
    %372 = vmatpush1.xpose.msra.mxu0 0.0
    %373 = vmatprep.subr.mxu0 0.0
    %374 = vmatpush1.xpose.msra.mxu0 0.0
    %375 = vmatprep.subr.mxu0 0.0
    %376 = vmatpush1.xpose.msra.mxu0 %v337
    %377 = vmatprep.subr.mxu0 0.0
    %378 = vmatpush2.xpose.msra.mxu0 0.0
    %379 = vmatprep.subr.mxu0 0.0
    %380 = vmatpush2.xpose.msra.mxu0 0.0
    %381 = vmatprep.subr.mxu0 0.0
    %382 = vmatpush2.xpose.msra.mxu0 0.0
    %383 = vmatprep.subr.mxu0 0.0
    %384 = vmatpush2.xpose.msra.mxu0 0.0
    %385 = vmatprep.subr.mxu0 0.0
    %386 = vmatpush2.xpose.msra.mxu0 0.0
    %387 = vmatprep.subr.mxu0 0.0
    %388 = vmatpush2.xpose.msra.mxu0 0.0
    %389 = vmatprep.subr.mxu0 0.0
    %390 = vmatpush2.xpose.msra.mxu0 0.0
    %391 = vmatprep.subr.mxu0 0.0
    %392 = vmatpush2.xpose.msra.mxu0 0.0
    %393 = vmatprep.subr.mxu0 0.0
    %394 = vmatpush2.xpose.msra.mxu0 0.0
    %395 = vmatprep.subr.mxu0 0.0
    %396 = vmatpush2.xpose.msra.mxu0 0.0
    %397 = vmatprep.subr.mxu0 0.0
    %398 = vmatpush2.xpose.msra.mxu0 0.0
    %399 = vmatprep.subr.mxu0 0.0
    %400 = vmatpush2.xpose.msra.mxu0 0.0
    %401 = vmatprep.subr.mxu0 0.0
    %402 = vmatpush2.xpose.msra.mxu0 0.0
    %403 = vmatprep.subr.mxu0 0.0
    %404 = vmatpush2.xpose.msra.mxu0 0.0
    %405 = vmatprep.subr.mxu0 0.0
    %406 = vmatpush2.xpose.msra.mxu0 0.0
    %407 = vmatprep.subr.mxu0 0.0
    %408 = vmatpush2.xpose.msra.mxu0 0.0
    %409 = vmatprep.mubr.f32.mxu0 0.0
    %410 = vmatmul.mubr.f32.gmra.mxu0 %v338
    %v411 = vpop.f32.mrf.mxu0
    %v412 = vadd.f32 %v343, %v411
    %v413 = vpop.f32.mrf.mxu0
    %414 = vdwg.mxu0
    %vm415 = vcmask 27648
    %416 = vst.msk [vmem:[#allocation8] sm:$0xf] %vm415, %v412
    // Predicated region
    $region42: #{tpu_custom_call.1} parent=1 // pred_check
      _
    $region43: #{tpu_custom_call.1} parent=1 // pred_check_branch
      %418 = sbr.rel (0) target = $region45
    $region44: #{tpu_custom_call.1} parent=1 // pred_region
      %s420 = ssub.s32 64, 64
      %421 = vsyncadd [#allocation4], %s420
      %s423 = sshll.u32 [#allocation8], 4
      %s424 = int_to_ptr.vmem [resolvable:$true] %s423
      %426 = dma.vmem_to_hbm [thread:$0]  %s424, 64, %s7, [#allocation4]
    $region45: #{tpu_custom_call.1} parent=1 // pred_fallthru
      _
    // Predicated region
    $region46: #{tpu_custom_call.1} parent=1 // pred_check
      _
    $region47: #{tpu_custom_call.1} parent=1 // pred_check_branch
      %428 = sbr.rel (0) target = $region49
    $region48: #{tpu_custom_call.1} parent=1 // pred_region
      %429 = dma.done [#allocation4], 64
    $region49: #{tpu_custom_call.1} parent=1 // pred_fallthru
      _
    %430 = vsyncpa [#allocation3], 1
    %431 = vsyncpa [#allocation6], 1
    %432 = vsyncpa [#allocation4], 1

</llo_original>
